<compile_context>
chip_gen: v7x
topology: tpu7x:2x2x1
jax: 0.10.0
libtpu: 0.0.40
codegen_flags: <defaults>
</compile_context>

<pallas_src>
import functools
import math

import jax
import jax.numpy as jnp
import numpy as np
from jax.experimental import pallas as pl
from jax.experimental.pallas import tpu as pltpu

_LOG_2PI = math.log(2.0 * math.pi)
# Batch-tile granularity along the sublane axis; 16 is safe for f32 and bf16.
_SUBLANE = 16


def _gaussian_logprob_kernel(x_ref, m_ref, g_ref, s_ref, o_ref, *, dim):
    """One batch tile.

    x_ref: (TB, F)    full input features (scope gather happens in-kernel)
    m_ref: (TB, K*D)  means, row-major (K Gaussians x D dims, D fastest)
    g_ref: (F, K*D)   constant 0/1 gather+broadcast matrix (bf16, exact)
    s_ref: (K*D, K)   constant 0/1 per-Gaussian summation matrix (bf16, exact)
    o_ref: (TB, K)    log N(x_scope | mean_k, I)
    """
    f32, bf16 = jnp.float32, jnp.bfloat16
    g = g_ref[...]
    s = s_ref[...]

    # x_scope broadcast over the K Gaussians:  xg[b, k*D + d] = x[b, scope[d]].
    # Done on the MXU with a constant selection matrix; a hi/lo bf16 split of
    # the LHS keeps it f32-exact (the 0/1 RHS is exactly representable in bf16).
    x = x_ref[...]
    if x.dtype == bf16:
        xg = jnp.dot(x, g, preferred_element_type=f32)
    else:
        xf = x.astype(f32)
        x_hi = xf.astype(bf16)
        x_lo = (xf - x_hi.astype(f32)).astype(bf16)
        xg = (jnp.dot(x_hi, g, preferred_element_type=f32)
              + jnp.dot(x_lo, g, preferred_element_type=f32))

    # Subtract & square stay on the VPU in f32.
    diff = m_ref[...].astype(f32) - xg              # (TB, K*D)
    sq = diff * diff                                # (TB, K*D)

    # Per-Gaussian sum over each group of D lanes: constant 0/1 matrix on the
    # MXU (a cross-lane XLU reduce here would dominate this HBM-bound kernel).
    sq_hi = sq.astype(bf16)
    sq_lo = (sq - sq_hi.astype(f32)).astype(bf16)
    sqsum = (jnp.dot(sq_hi, s, preferred_element_type=f32)
             + jnp.dot(sq_lo, s, preferred_element_type=f32))   # (TB, K)

    o_ref[...] = (-0.5 * sqsum - (0.5 * dim * _LOG_2PI)).astype(o_ref.dtype)


def _round_up(x, m):
    return ((x + m - 1) // m) * m


def _choose_tile(batch, max_tile_b):
    """Pick a batch tile (multiple of _SUBLANE, <= max_tile_b).

    Prefers a tile that divides `batch` exactly (no padding copy); falls back
    to padding when no reasonable divisor exists.  Returns (tile, padded_batch).
    """
    max_tile_b = max(_SUBLANE, (max_tile_b // _SUBLANE) * _SUBLANE)
    cap = min(max_tile_b, _round_up(batch, _SUBLANE))
    if batch % _SUBLANE == 0:
        for t in range(cap, _SUBLANE - 1, -_SUBLANE):
            if batch % t == 0:
                if 4 * t >= cap:        # within 4x of the target tile: accept
                    return t, batch
                break                   # only tiny divisors exist; pad instead
    tile = cap
    return tile, _round_up(batch, tile)


def gaussian_tensor_forward(inputs, means, region, *, tile_b=2048,
                            out_dtype=jnp.float32):
    """Pallas TPU implementation of GaussianTensor.forward.

    inputs: (B, F) float32 or bfloat16 - full feature vectors.
    means:  (B, K*K) or (B, K, K) float32 or bfloat16, K == len(region).
    region: iterable of feature indices; sorted internally, exactly like the
            PyTorch module (self.scope = sorted(list(region))).
    Returns log_pdf: (B, K) in out_dtype.  (`marginalized` is unused by the
    reference forward and therefore not modeled.)
    """
    scope = sorted(int(r) for r in region)
    k = len(scope)
    d = k
    kd = k * d
    b, f = inputs.shape
    means2d = means.reshape(b, kd)          # free: row-major compatible view

    # Constant 0/1 matrices implementing the static scope gather (broadcast
    # over the K Gaussians) and the per-Gaussian sum over D.  Exact in bf16.
    g_np = np.zeros((f, kd), dtype=np.float32)
    s_np = np.zeros((kd, k), dtype=np.float32)
    for kk in range(k):
        s_np[kk * d:(kk + 1) * d, kk] = 1.0
        for dd, col in enumerate(scope):
            g_np[col, kk * d + dd] = 1.0
    g_sel = jnp.asarray(g_np, dtype=jnp.bfloat16)
    s_sum = jnp.asarray(s_np, dtype=jnp.bfloat16)

    tile, b_pad = _choose_tile(b, tile_b)
    if b_pad != b:
        # TODO(synk): switch to Pallas partial-block masking (grid = cdiv) to
        # avoid this extra pad copy if batch padding ever shows up in profiles.
        pad = b_pad - b
        inputs = jnp.pad(inputs, ((0, pad), (0, 0)))
        means2d = jnp.pad(means2d, ((0, pad), (0, 0)))
    grid = (b_pad // tile,)

    kernel = functools.partial(_gaussian_logprob_kernel, dim=d)
    out = pl.pallas_call(
        kernel,
        out_shape=jax.ShapeDtypeStruct((b_pad, k), out_dtype),
        grid_spec=pltpu.PrefetchScalarGridSpec(
            num_scalar_prefetch=0,
            grid=grid,
            in_specs=[
                pl.BlockSpec((tile, f), lambda i: (i, 0)),
                pl.BlockSpec((tile, kd), lambda i: (i, 0)),
                pl.BlockSpec((f, kd), lambda i: (0, 0)),   # constants: block
                pl.BlockSpec((kd, k), lambda i: (0, 0)),   # index never changes
            ],
            out_specs=pl.BlockSpec((tile, k), lambda i: (i, 0)),
        ),
        compiler_params=pltpu.CompilerParams(
            dimension_semantics=("parallel",),     # lets v7x shard over 2 TCs
            vmem_limit_bytes=32 * 1024 * 1024,     # fits all gens (v7x: 64 MiB)
        ),
    )(inputs, means2d, g_sel, s_sum)

    return out[:b] if b_pad != b else out


def _reference_forward(inputs, means, region):
    scope = sorted(int(r) for r in region)
    k = len(scope)
    x = inputs.astype(jnp.float32)[:, jnp.asarray(scope, dtype=jnp.int32)]
    m = means.astype(jnp.float32).reshape(-1, k, k)
    diff = m - x[:, None, :]
    return -0.5 * jnp.sum(diff * diff, axis=-1) - 0.5 * k * _LOG_2PI


if __name__ == "__main__":
    # Region of 8 variables (unsorted, with gaps) out of 16 input features.
    region = (11, 0, 3, 14, 6, 7, 9, 1)
    size = len(region)                    # K == D == 8
    B, F = 64, 16

    key = jax.random.PRNGKey(0)
    k_in, k_mu = jax.random.split(key)
    inputs = jax.random.normal(k_in, (B, F), dtype=jnp.float32)
    means = jax.random.normal(k_mu, (B, size * size), dtype=jnp.float32)

    ref = _reference_forward(inputs, means, region)

    # 1) f32 inputs, tile chosen automatically.
    log_pdf = jax.block_until_ready(gaussian_tensor_forward(inputs, means, region))
    assert log_pdf.shape == (B, size)
    assert jnp.allclose(log_pdf, ref, atol=5e-3, rtol=1e-3), (
        float(jnp.max(jnp.abs(log_pdf - ref))))

    # 2) multi-step "parallel" grid (tile_b=16 -> 4 grid steps).
    log_pdf2 = jax.block_until_ready(
        gaussian_tensor_forward(inputs, means, region, tile_b=16))
    assert jnp.allclose(log_pdf2, ref, atol=5e-3, rtol=1e-3)

    # 3) batch not divisible by the tile (exercises the padding path).
    B3 = 52
    log_pdf3 = jax.block_until_ready(
        gaussian_tensor_forward(inputs[:B3], means[:B3], region, tile_b=16))
    assert log_pdf3.shape == (B3, size)
    assert jnp.allclose(log_pdf3, ref[:B3], atol=5e-3, rtol=1e-3)

    # 4) bf16 means (halves the dominant HBM stream); kernel upcasts internally.
    means_bf16 = means.astype(jnp.bfloat16)
    log_pdf4 = jax.block_until_ready(
        gaussian_tensor_forward(inputs, means_bf16, region))
    ref4 = _reference_forward(inputs, means_bf16, region)
    assert jnp.allclose(log_pdf4, ref4, atol=5e-3, rtol=1e-3)

    print("KERNEL_OK")
</pallas_src>

<mosaic_0001>
module attributes {stable_mosaic.version = 11 : i64} {
  func.func @_gaussian_logprob_kernel(%arg0: i32, %arg1: memref<64x16xf32, #tpu.memory_space<vmem>>, %arg2: memref<64x64xf32, #tpu.memory_space<vmem>>, %arg3: memref<16x64xbf16, #tpu.memory_space<vmem>>, %arg4: memref<64x8xbf16, #tpu.memory_space<vmem>>, %arg5: memref<64x8xf32, #tpu.memory_space<vmem>>) attributes {dimension_semantics = [#tpu.dimension_semantics<parallel>], iteration_bounds = array<i64: 1>, scalar_prefetch = 0 : i64, scratch_operands = 0 : i64, tpu.core_type = #tpu.core_type<tc>, window_params = [{transform_indices = @transform_0, window_bounds = array<i64: 64, 16>}, {transform_indices = @transform_1, window_bounds = array<i64: 64, 64>}, {pipeline_mode = #tpu.pipeline_mode<synchronous>, transform_indices = @transform_2, window_bounds = array<i64: 16, 64>}, {pipeline_mode = #tpu.pipeline_mode<synchronous>, transform_indices = @transform_3, window_bounds = array<i64: 64, 8>}, {transform_indices = @transform_4, window_bounds = array<i64: 64, 8>}]} {
    %c0 = arith.constant 0 : index
    %c0_0 = arith.constant 0 : index
    %0 = vector.load %arg3[%c0, %c0_0] : memref<16x64xbf16, #tpu.memory_space<vmem>>, vector<16x64xbf16>
    %c0_1 = arith.constant 0 : index
    %c0_2 = arith.constant 0 : index
    %1 = vector.load %arg4[%c0_1, %c0_2] : memref<64x8xbf16, #tpu.memory_space<vmem>>, vector<64x8xbf16>
    %c0_3 = arith.constant 0 : index
    %c0_4 = arith.constant 0 : index
    %2 = vector.load %arg1[%c0_3, %c0_4] : memref<64x16xf32, #tpu.memory_space<vmem>>, vector<64x16xf32>
    %3 = arith.truncf %2 : vector<64x16xf32> to vector<64x16xbf16>
    %4 = arith.extf %3 : vector<64x16xbf16> to vector<64x16xf32>
    %5 = arith.subf %2, %4 : vector<64x16xf32>
    %6 = arith.truncf %5 : vector<64x16xf32> to vector<64x16xbf16>
    %cst = arith.constant dense<0.000000e+00> : vector<64x64xf32>
    %7 = tpu.matmul %3, %0, %cst {dimension_numbers = #tpu.dot_dimension_numbers<[1], [0], [0], [1], [0, 0, 1, 1], [], []>} : vector<64x16xbf16>, vector<16x64xbf16>, vector<64x64xf32> -> vector<64x64xf32>
    %cst_5 = arith.constant dense<0.000000e+00> : vector<64x64xf32>
    %8 = tpu.matmul %6, %0, %cst_5 {dimension_numbers = #tpu.dot_dimension_numbers<[1], [0], [0], [1], [0, 0, 1, 1], [], []>} : vector<64x16xbf16>, vector<16x64xbf16>, vector<64x64xf32> -> vector<64x64xf32>
    %9 = arith.addf %7, %8 : vector<64x64xf32>
    %c0_6 = arith.constant 0 : index
    %c0_7 = arith.constant 0 : index
    %10 = vector.load %arg2[%c0_6, %c0_7] : memref<64x64xf32, #tpu.memory_space<vmem>>, vector<64x64xf32>
    %11 = arith.subf %10, %9 : vector<64x64xf32>
    %12 = arith.mulf %11, %11 : vector<64x64xf32>
    %13 = arith.truncf %12 : vector<64x64xf32> to vector<64x64xbf16>
    %14 = arith.extf %13 : vector<64x64xbf16> to vector<64x64xf32>
    %15 = arith.subf %12, %14 : vector<64x64xf32>
    %16 = arith.truncf %15 : vector<64x64xf32> to vector<64x64xbf16>
    %cst_8 = arith.constant dense<0.000000e+00> : vector<64x8xf32>
    %17 = tpu.matmul %13, %1, %cst_8 {dimension_numbers = #tpu.dot_dimension_numbers<[1], [0], [0], [1], [0, 0, 1, 1], [], []>} : vector<64x64xbf16>, vector<64x8xbf16>, vector<64x8xf32> -> vector<64x8xf32>
    %cst_9 = arith.constant dense<0.000000e+00> : vector<64x8xf32>
    %18 = tpu.matmul %16, %1, %cst_9 {dimension_numbers = #tpu.dot_dimension_numbers<[1], [0], [0], [1], [0, 0, 1, 1], [], []>} : vector<64x64xbf16>, vector<64x8xbf16>, vector<64x8xf32> -> vector<64x8xf32>
    %19 = arith.addf %17, %18 : vector<64x8xf32>
    %cst_10 = arith.constant -5.000000e-01 : f32
    %20 = vector.broadcast %cst_10 : f32 to vector<64x8xf32>
    %21 = arith.mulf %20, %19 : vector<64x8xf32>
    %cst_11 = arith.constant 7.35150814 : f32
    %22 = vector.broadcast %cst_11 : f32 to vector<64x8xf32>
    %23 = arith.subf %21, %22 : vector<64x8xf32>
    %c0_12 = arith.constant 0 : index
    %c0_13 = arith.constant 0 : index
    %24 = vector.load %arg5[%c0_12, %c0_13] : memref<64x8xf32, #tpu.memory_space<vmem>>, vector<64x8xf32>
    tpu.vector_store %arg5[%c0_12, %c0_13], %23 {strides = array<i32>} : memref<64x8xf32, #tpu.memory_space<vmem>>, vector<64x8xf32>,
    return
  }
  func.func @transform_0(%arg0: i32) -> (i32, i32) {
    %c0_i32 = arith.constant 0 : i32
    %c0_i32_0 = arith.constant 0 : i32
    return %arg0, %c0_i32 : i32, i32
  }
  func.func @transform_1(%arg0: i32) -> (i32, i32) {
    %c0_i32 = arith.constant 0 : i32
    %c0_i32_0 = arith.constant 0 : i32
    return %arg0, %c0_i32 : i32, i32
  }
  func.func @transform_2(%arg0: i32) -> (i32, i32) {
    %c0_i32 = arith.constant 0 : i32
    %c0_i32_0 = arith.constant 0 : i32
    %c0_i32_1 = arith.constant 0 : i32
    return %c0_i32, %c0_i32_0 : i32, i32
  }
  func.func @transform_3(%arg0: i32) -> (i32, i32) {
    %c0_i32 = arith.constant 0 : i32
    %c0_i32_0 = arith.constant 0 : i32
    %c0_i32_1 = arith.constant 0 : i32
    return %c0_i32, %c0_i32_0 : i32, i32
  }
  func.func @transform_4(%arg0: i32) -> (i32, i32) {
    %c0_i32 = arith.constant 0 : i32
    %c0_i32_0 = arith.constant 0 : i32
    return %arg0, %c0_i32 : i32, i32
  }
}

</mosaic_0001>

<llo_original>
// kernel: tpu_custom_call.1
$region0: #{tpu_custom_call.1}
  #allocation0 [shape = 'u32[]', space=smem, size = 0x4, offset = 0x4, fixed_abs, tag = 'smem constant byte address 0x4 - core index']
  #allocation1 [shape = 'u32[144,128]{1,0:T(1,128)}', space=vmem, size = 0x12000, scoped, tag = 'internal scratch']
  %s0 = inlined_call_operand.vmem [shape: f32[64,16], index: 0, kind: input, shape index: {}]
  %s1 = inlined_call_operand.vmem [shape: f32[64,64], index: 1, kind: input, shape index: {}]
  %s2 = inlined_call_operand.vmem [shape: bf16[16,64], index: 2, kind: input, shape index: {}]
  %s3 = inlined_call_operand.vmem [shape: bf16[64,8], index: 3, kind: input, shape index: {}]
  %s4 = inlined_call_operand.vmem [shape: f32[64,8], index: 4, kind: output, shape index: {}]
  %s5 = sld [smem:[#allocation0]]
  $region26: #{tpu_custom_call.1} parent=0
    _
  %s7 = ssub.s32 1, %s5
  %s8 = scalar_select 0, %s7, %s5
  // Predicated region
  $region2: #{tpu_custom_call.1} parent=0 // pred_check
    _
  $region3: #{tpu_custom_call.1} parent=0 // pred_check_branch
    %10 = sbr.rel (0) target = $region5
  $region4: #{tpu_custom_call.1} parent=0 // pred_region
    _
  $region5: #{tpu_custom_call.1} parent=0 // pred_fallthru
    _
  // Predicated region
  $region6: #{tpu_custom_call.1} parent=0 // pred_check
    _
  $region7: #{tpu_custom_call.1} parent=0 // pred_check_branch
    %12 = sbr.rel (0) target = $region9
  $region8: #{tpu_custom_call.1} parent=0 // pred_region
    _
  $region9: #{tpu_custom_call.1} parent=0 // pred_fallthru
    _
  // Predicated region
  $region10: #{tpu_custom_call.1} parent=0 // pred_check
    _
  $region11: #{tpu_custom_call.1} parent=0 // pred_check_branch
    %14 = sbr.rel (0) target = $region13
  $region12: #{tpu_custom_call.1} parent=0 // pred_region
    _
  $region13: #{tpu_custom_call.1} parent=0 // pred_fallthru
    _
  // Predicated region
  $region14: #{tpu_custom_call.1} parent=0 // pred_check
    _
  $region15: #{tpu_custom_call.1} parent=0 // pred_check_branch
    %16 = sbr.rel (0) target = $region17
  $region16: #{tpu_custom_call.1} parent=0 // pred_region
    _
  $region17: #{tpu_custom_call.1} parent=0 // pred_fallthru
    _
  %v18 = vld [vmem:[%s2] sm:$0xf]
  %v19 = vld [vmem:[%s2 + $0x4] sm:$0xf]
  %v20 = vld [vmem:[%s3] sm:$0xf]
  %v21 = vld [vmem:[%s3 + $0x4] sm:$0xf]
  %v22 = vld [vmem:[%s3 + $0x8] sm:$0xf]
  %v23 = vld [vmem:[%s3 + $0xc] sm:$0xf]
  %v24 = vld [vmem:[%s3 + $0x10] sm:$0xf]
  %v25 = vld [vmem:[%s3 + $0x14] sm:$0xf]
  %v26 = vld [vmem:[%s3 + $0x18] sm:$0xf]
  %v27 = vld [vmem:[%s3 + $0x1c] sm:$0xf]
  %v28 = vld [vmem:[%s0] sm:$0xff]
  %v29 = vld [vmem:[%s0 + $0x8] sm:$0xff]
  %v30 = vld [vmem:[%s0 + $0x10] sm:$0xff]
  %v31 = vld [vmem:[%s0 + $0x18] sm:$0xff]
  %v32 = vld [vmem:[%s0 + $0x20] sm:$0xff]
  %v33 = vld [vmem:[%s0 + $0x28] sm:$0xff]
  %v34 = vld [vmem:[%s0 + $0x30] sm:$0xff]
  %v35 = vld [vmem:[%s0 + $0x38] sm:$0xff]
  %v36 = vpack.c.bf16 %v29, %v28
  %v37 = vpack.c.bf16 %v31, %v30
  %v38 = vpack.c.bf16 %v33, %v32
  %v39 = vpack.c.bf16 %v35, %v34
  %v40 = vunpack.c.l.bf16 %v36
  %v41 = vunpack.c.h.bf16 %v36
  %v42 = vunpack.c.l.bf16 %v37
  %v43 = vunpack.c.h.bf16 %v37
  %v44 = vunpack.c.l.bf16 %v38
  %v45 = vunpack.c.h.bf16 %v38
  %v46 = vunpack.c.l.bf16 %v39
  %v47 = vunpack.c.h.bf16 %v39
  %v48 = vsub.f32 %v28, %v40
  %v49 = vsub.f32 %v29, %v41
  %v50 = vsub.f32 %v30, %v42
  %v51 = vsub.f32 %v31, %v43
  %v52 = vsub.f32 %v32, %v44
  %v53 = vsub.f32 %v33, %v45
  %v54 = vsub.f32 %v34, %v46
  %v55 = vsub.f32 %v35, %v47
  %v56 = vpack.c.bf16 %v49, %v48
  %v57 = vpack.c.bf16 %v51, %v50
  %v58 = vpack.c.bf16 %v53, %v52
  %v59 = vpack.c.bf16 %v55, %v54
  %v62 = vunpack.c.l.b16 %v18
  %v63 = vunpack.c.l.b16 %v19
  %v64 = vpack.c.b16 %v63, %v62
  %vm66 = vcmask 130048
  %v68 = vsel %vm66, %v56, 0
  %v71 = vsel %vm66, %v57, 0
  %v74 = vsel %vm66, %v58, 0
  %v77 = vsel %vm66, %v59, 0
  %79 = vmatprep.subr.bf16.mxu0 0
  %80 = vmatpush1.bf16.msra.mxu0 %v64
  %81 = vmatprep.subr.bf16.mxu0 0
  %82 = vmatpush1.bf16.msra.mxu0 0
  %83 = vmatprep.subr.bf16.mxu0 0
  %84 = vmatpush1.bf16.msra.mxu0 0
  %85 = vmatprep.subr.bf16.mxu0 0
  %86 = vmatpush1.bf16.msra.mxu0 0
  %87 = vmatprep.subr.bf16.mxu0 0
  %88 = vmatpush1.bf16.msra.mxu0 0
  %89 = vmatprep.subr.bf16.mxu0 0
  %90 = vmatpush1.bf16.msra.mxu0 0
  %91 = vmatprep.subr.bf16.mxu0 0
  %92 = vmatpush1.bf16.msra.mxu0 0
  %93 = vmatprep.subr.bf16.mxu0 0
  %94 = vmatpush1.bf16.msra.mxu0 0
  %95 = vmatprep.subr.bf16.mxu0 0
  %96 = vmatpush1.bf16.msra.mxu0 0
  %97 = vmatprep.subr.bf16.mxu0 0
  %98 = vmatpush1.bf16.msra.mxu0 0
  %99 = vmatprep.subr.bf16.mxu0 0
  %100 = vmatpush1.bf16.msra.mxu0 0
  %101 = vmatprep.subr.bf16.mxu0 0
  %102 = vmatpush1.bf16.msra.mxu0 0
  %103 = vmatprep.subr.bf16.mxu0 0
  %104 = vmatpush1.bf16.msra.mxu0 0
  %105 = vmatprep.subr.bf16.mxu0 0
  %106 = vmatpush1.bf16.msra.mxu0 0
  %107 = vmatprep.subr.bf16.mxu0 0
  %108 = vmatpush1.bf16.msra.mxu0 0
  %109 = vmatprep.subr.bf16.mxu0 0
  %110 = vmatpush1.bf16.msra.mxu0 0
  %111 = vmatprep.mubr.bf16.mxu0 0
  %112 = vmatmul.mubr.bf16.gmra.mrb[0].mxu0 %v68
  %v113 = vpop.f32.mrb[0].mxu0
  %v114 = vadd.f32 0.0, %v113
  %v115 = vpop.f32.mrb[0].mxu0
  %v116 = vpop.f32.mrb[0].mxu0
  %v117 = vadd.f32 0.0, %v116
  %v118 = vpop.f32.mrb[0].mxu0
  %119 = vmatprep.mubr.bf16.mxu0 0
  %120 = vmatmul.mubr.bf16.gmra.mrb[0].mxu0 %v71
  %v121 = vpop.f32.mrb[0].mxu0
  %v122 = vadd.f32 0.0, %v121
  %v123 = vpop.f32.mrb[0].mxu0
  %v124 = vpop.f32.mrb[0].mxu0
  %v125 = vadd.f32 0.0, %v124
  %v126 = vpop.f32.mrb[0].mxu0
  %127 = vmatprep.mubr.bf16.mxu0 0
  %128 = vmatmul.mubr.bf16.gmra.mrb[0].mxu0 %v74
  %v129 = vpop.f32.mrb[0].mxu0
  %v130 = vadd.f32 0.0, %v129
  %v131 = vpop.f32.mrb[0].mxu0
  %v132 = vpop.f32.mrb[0].mxu0
  %v133 = vadd.f32 0.0, %v132
  %v134 = vpop.f32.mrb[0].mxu0
  %135 = vmatprep.mubr.bf16.mxu0 0
  %136 = vmatmul.mubr.bf16.gmra.mrb[0].mxu0 %v77
  %v137 = vpop.f32.mrb[0].mxu0
  %v138 = vadd.f32 0.0, %v137
  %v139 = vpop.f32.mrb[0].mxu0
  %v140 = vpop.f32.mrb[0].mxu0
  %v141 = vadd.f32 0.0, %v140
  %v142 = vpop.f32.mrb[0].mxu0
  %143 = vdwg.mxu0
  %v145 = vsel %vm66, %v36, 0
  %v148 = vsel %vm66, %v37, 0
  %v151 = vsel %vm66, %v38, 0
  %v154 = vsel %vm66, %v39, 0
  %156 = vmatprep.subr.bf16.mxu0 0
  %157 = vmatpush1.bf16.msra.mxu0 %v64
  %158 = vmatprep.subr.bf16.mxu0 0
  %159 = vmatpush1.bf16.msra.mxu0 0
  %160 = vmatprep.subr.bf16.mxu0 0
  %161 = vmatpush1.bf16.msra.mxu0 0
  %162 = vmatprep.subr.bf16.mxu0 0
  %163 = vmatpush1.bf16.msra.mxu0 0
  %164 = vmatprep.subr.bf16.mxu0 0
  %165 = vmatpush1.bf16.msra.mxu0 0
  %166 = vmatprep.subr.bf16.mxu0 0
  %167 = vmatpush1.bf16.msra.mxu0 0
  %168 = vmatprep.subr.bf16.mxu0 0
  %169 = vmatpush1.bf16.msra.mxu0 0
  %170 = vmatprep.subr.bf16.mxu0 0
  %171 = vmatpush1.bf16.msra.mxu0 0
  %172 = vmatprep.subr.bf16.mxu0 0
  %173 = vmatpush1.bf16.msra.mxu0 0
  %174 = vmatprep.subr.bf16.mxu0 0
  %175 = vmatpush1.bf16.msra.mxu0 0
  %176 = vmatprep.subr.bf16.mxu0 0
  %177 = vmatpush1.bf16.msra.mxu0 0
  %178 = vmatprep.subr.bf16.mxu0 0
  %179 = vmatpush1.bf16.msra.mxu0 0
  %180 = vmatprep.subr.bf16.mxu0 0
  %181 = vmatpush1.bf16.msra.mxu0 0
  %182 = vmatprep.subr.bf16.mxu0 0
  %183 = vmatpush1.bf16.msra.mxu0 0
  %184 = vmatprep.subr.bf16.mxu0 0
  %185 = vmatpush1.bf16.msra.mxu0 0
  %186 = vmatprep.subr.bf16.mxu0 0
  %187 = vmatpush1.bf16.msra.mxu0 0
  %188 = vmatprep.mubr.bf16.mxu0 0
  %189 = vmatmul.mubr.bf16.gmra.mrb[0].mxu0 %v145
  %v190 = vpop.f32.mrb[0].mxu0
  %v191 = vadd.f32 %v114, %v190
  %v192 = vpop.f32.mrb[0].mxu0
  %v193 = vpop.f32.mrb[0].mxu0
  %v194 = vadd.f32 %v117, %v193
  %v195 = vpop.f32.mrb[0].mxu0
  %196 = vmatprep.mubr.bf16.mxu0 0
  %197 = vmatmul.mubr.bf16.gmra.mrb[0].mxu0 %v148
  %v198 = vpop.f32.mrb[0].mxu0
  %v199 = vadd.f32 %v122, %v198
  %v200 = vpop.f32.mrb[0].mxu0
  %v201 = vpop.f32.mrb[0].mxu0
  %v202 = vadd.f32 %v125, %v201
  %v203 = vpop.f32.mrb[0].mxu0
  %204 = vmatprep.mubr.bf16.mxu0 0
  %205 = vmatmul.mubr.bf16.gmra.mrb[0].mxu0 %v151
  %v206 = vpop.f32.mrb[0].mxu0
  %v207 = vadd.f32 %v130, %v206
  %v208 = vpop.f32.mrb[0].mxu0
  %v209 = vpop.f32.mrb[0].mxu0
  %v210 = vadd.f32 %v133, %v209
  %v211 = vpop.f32.mrb[0].mxu0
  %212 = vmatprep.mubr.bf16.mxu0 0
  %213 = vmatmul.mubr.bf16.gmra.mrb[0].mxu0 %v154
  %v214 = vpop.f32.mrb[0].mxu0
  %v215 = vadd.f32 %v138, %v214
  %v216 = vpop.f32.mrb[0].mxu0
  %v217 = vpop.f32.mrb[0].mxu0
  %v218 = vadd.f32 %v141, %v217
  %v219 = vpop.f32.mrb[0].mxu0
  %220 = vdwg.mxu0
  %v221 = vld [vmem:[%s1] sm:$0xff]
  %v222 = vld [vmem:[%s1 + $0x8] sm:$0xff]
  %v223 = vld [vmem:[%s1 + $0x10] sm:$0xff]
  %v224 = vld [vmem:[%s1 + $0x18] sm:$0xff]
  %v225 = vld [vmem:[%s1 + $0x20] sm:$0xff]
  %v226 = vld [vmem:[%s1 + $0x28] sm:$0xff]
  %v227 = vld [vmem:[%s1 + $0x30] sm:$0xff]
  %v228 = vld [vmem:[%s1 + $0x38] sm:$0xff]
  %v229 = vsub.f32 %v221, %v191
  %v230 = vsub.f32 %v222, %v194
  %v231 = vsub.f32 %v223, %v199
  %v232 = vsub.f32 %v224, %v202
  %v233 = vsub.f32 %v225, %v207
  %v234 = vsub.f32 %v226, %v210
  %v235 = vsub.f32 %v227, %v215
  %v236 = vsub.f32 %v228, %v218
  %v237 = vmul.f32 %v229, %v229
  %v238 = vmul.f32 %v230, %v230
  %v239 = vmul.f32 %v231, %v231
  %v240 = vmul.f32 %v232, %v232
  %v241 = vmul.f32 %v233, %v233
  %v242 = vmul.f32 %v234, %v234
  %v243 = vmul.f32 %v235, %v235
  %v244 = vmul.f32 %v236, %v236
  %v245 = vpack.c.bf16 %v238, %v237
  %v246 = vpack.c.bf16 %v240, %v239
  %v247 = vpack.c.bf16 %v242, %v241
  %v248 = vpack.c.bf16 %v244, %v243
  %v249 = vunpack.c.l.bf16 %v245
  %v250 = vunpack.c.h.bf16 %v245
  %v251 = vunpack.c.l.bf16 %v246
  %v252 = vunpack.c.h.bf16 %v246
  %v253 = vunpack.c.l.bf16 %v247
  %v254 = vunpack.c.h.bf16 %v247
  %v255 = vunpack.c.l.bf16 %v248
  %v256 = vunpack.c.h.bf16 %v248
  %v257 = vsub.f32 %v237, %v249
  %v258 = vsub.f32 %v238, %v250
  %v259 = vsub.f32 %v239, %v251
  %v260 = vsub.f32 %v240, %v252
  %v261 = vsub.f32 %v241, %v253
  %v262 = vsub.f32 %v242, %v254
  %v263 = vsub.f32 %v243, %v255
  %v264 = vsub.f32 %v244, %v256
  %v265 = vpack.c.bf16 %v258, %v257
  %v266 = vpack.c.bf16 %v260, %v259
  %v267 = vpack.c.bf16 %v262, %v261
  %v268 = vpack.c.bf16 %v264, %v263
  %v277 = vunpack.c.l.b16 %v20
  %v278 = vunpack.c.l.b16 %v21
  %v279 = vunpack.c.l.b16 %v22
  %v280 = vunpack.c.l.b16 %v23
  %v281 = vunpack.c.l.b16 %v24
  %v282 = vunpack.c.l.b16 %v25
  %v283 = vunpack.c.l.b16 %v26
  %v284 = vunpack.c.l.b16 %v27
  %v285 = vpack.c.b16 %v278, %v277
  %v286 = vpack.c.b16 %v280, %v279
  %v287 = vpack.c.b16 %v282, %v281
  %v288 = vpack.c.b16 %v284, %v283
  %vm293 = vcmask 523264
  %v295 = vsel %vm293, %v265, 0
  %v298 = vsel %vm293, %v266, 0
  %v301 = vsel %vm293, %v267, 0
  %v304 = vsel %vm293, %v268, 0
  %306 = vmatprep.subr.bf16.mxu0 0
  %307 = vmatpush1.bf16.msra.mxu0 %v285
  %308 = vmatprep.subr.bf16.mxu0 0
  %309 = vmatpush1.bf16.msra.mxu0 %v286
  %310 = vmatprep.subr.bf16.mxu0 0
  %311 = vmatpush1.bf16.msra.mxu0 %v287
  %312 = vmatprep.subr.bf16.mxu0 0
  %313 = vmatpush1.bf16.msra.mxu0 %v288
  %314 = vmatprep.subr.bf16.mxu0 0
  %315 = vmatpush1.bf16.msra.mxu0 0
  %316 = vmatprep.subr.bf16.mxu0 0
  %317 = vmatpush1.bf16.msra.mxu0 0
  %318 = vmatprep.subr.bf16.mxu0 0
  %319 = vmatpush1.bf16.msra.mxu0 0
  %320 = vmatprep.subr.bf16.mxu0 0
  %321 = vmatpush1.bf16.msra.mxu0 0
  %322 = vmatprep.subr.bf16.mxu0 0
  %323 = vmatpush1.bf16.msra.mxu0 0
  %324 = vmatprep.subr.bf16.mxu0 0
  %325 = vmatpush1.bf16.msra.mxu0 0
  %326 = vmatprep.subr.bf16.mxu0 0
  %327 = vmatpush1.bf16.msra.mxu0 0
  %328 = vmatprep.subr.bf16.mxu0 0
  %329 = vmatpush1.bf16.msra.mxu0 0
  %330 = vmatprep.subr.bf16.mxu0 0
  %331 = vmatpush1.bf16.msra.mxu0 0
  %332 = vmatprep.subr.bf16.mxu0 0
  %333 = vmatpush1.bf16.msra.mxu0 0
  %334 = vmatprep.subr.bf16.mxu0 0
  %335 = vmatpush1.bf16.msra.mxu0 0
  %336 = vmatprep.subr.bf16.mxu0 0
  %337 = vmatpush1.bf16.msra.mxu0 0
  %338 = vmatprep.mubr.bf16.mxu0 0
  %339 = vmatmul.mubr.bf16.gmra.mrb[0].mxu0 %v295
  %v340 = vpop.f32.mrb[0].mxu0
  %v341 = vadd.f32 0.0, %v340
  %v342 = vpop.f32.mrb[0].mxu0
  %v343 = vpop.f32.mrb[0].mxu0
  %v344 = vadd.f32 0.0, %v343
  %v345 = vpop.f32.mrb[0].mxu0
  %346 = vmatprep.mubr.bf16.mxu0 0
  %347 = vmatmul.mubr.bf16.gmra.mrb[0].mxu0 %v298
  %v348 = vpop.f32.mrb[0].mxu0
  %v349 = vadd.f32 0.0, %v348
  %v350 = vpop.f32.mrb[0].mxu0
  %v351 = vpop.f32.mrb[0].mxu0
  %v352 = vadd.f32 0.0, %v351
  %v353 = vpop.f32.mrb[0].mxu0
  %354 = vmatprep.mubr.bf16.mxu0 0
  %355 = vmatmul.mubr.bf16.gmra.mrb[0].mxu0 %v301
  %v356 = vpop.f32.mrb[0].mxu0
  %v357 = vadd.f32 0.0, %v356
  %v358 = vpop.f32.mrb[0].mxu0
  %v359 = vpop.f32.mrb[0].mxu0
  %v360 = vadd.f32 0.0, %v359
  %v361 = vpop.f32.mrb[0].mxu0
  %362 = vmatprep.mubr.bf16.mxu0 0
  %363 = vmatmul.mubr.bf16.gmra.mrb[0].mxu0 %v304
  %v364 = vpop.f32.mrb[0].mxu0
  %v365 = vadd.f32 0.0, %v364
  %v366 = vpop.f32.mrb[0].mxu0
  %v367 = vpop.f32.mrb[0].mxu0
  %v368 = vadd.f32 0.0, %v367
  %v369 = vpop.f32.mrb[0].mxu0
  %370 = vdwg.mxu0
  %v372 = vsel %vm293, %v245, 0
  %v375 = vsel %vm293, %v246, 0
  %v378 = vsel %vm293, %v247, 0
  %v381 = vsel %vm293, %v248, 0
  %383 = vmatprep.subr.bf16.mxu0 0
  %384 = vmatpush1.bf16.msra.mxu0 %v285
  %385 = vmatprep.subr.bf16.mxu0 0
  %386 = vmatpush1.bf16.msra.mxu0 %v286
  %387 = vmatprep.subr.bf16.mxu0 0
  %388 = vmatpush1.bf16.msra.mxu0 %v287
  %389 = vmatprep.subr.bf16.mxu0 0
  %390 = vmatpush1.bf16.msra.mxu0 %v288
  %391 = vmatprep.subr.bf16.mxu0 0
  %392 = vmatpush1.bf16.msra.mxu0 0
  %393 = vmatprep.subr.bf16.mxu0 0
  %394 = vmatpush1.bf16.msra.mxu0 0
  %395 = vmatprep.subr.bf16.mxu0 0
  %396 = vmatpush1.bf16.msra.mxu0 0
  %397 = vmatprep.subr.bf16.mxu0 0
  %398 = vmatpush1.bf16.msra.mxu0 0
  %399 = vmatprep.subr.bf16.mxu0 0
  %400 = vmatpush1.bf16.msra.mxu0 0
  %401 = vmatprep.subr.bf16.mxu0 0
  %402 = vmatpush1.bf16.msra.mxu0 0
  %403 = vmatprep.subr.bf16.mxu0 0
  %404 = vmatpush1.bf16.msra.mxu0 0
  %405 = vmatprep.subr.bf16.mxu0 0
  %406 = vmatpush1.bf16.msra.mxu0 0
  %407 = vmatprep.subr.bf16.mxu0 0
  %408 = vmatpush1.bf16.msra.mxu0 0
  %409 = vmatprep.subr.bf16.mxu0 0
  %410 = vmatpush1.bf16.msra.mxu0 0
  %411 = vmatprep.subr.bf16.mxu0 0
  %412 = vmatpush1.bf16.msra.mxu0 0
  %413 = vmatprep.subr.bf16.mxu0 0
  %414 = vmatpush1.bf16.msra.mxu0 0
  %415 = vmatprep.mubr.bf16.mxu0 0
  %416 = vmatmul.mubr.bf16.gmra.mrb[0].mxu0 %v372
  %v417 = vpop.f32.mrb[0].mxu0
  %v418 = vadd.f32 %v341, %v417
  %v419 = vpop.f32.mrb[0].mxu0
  %v420 = vpop.f32.mrb[0].mxu0
  %v421 = vadd.f32 %v344, %v420
  %v422 = vpop.f32.mrb[0].mxu0
  %423 = vmatprep.mubr.bf16.mxu0 0
  %424 = vmatmul.mubr.bf16.gmra.mrb[0].mxu0 %v375
  %v425 = vpop.f32.mrb[0].mxu0
  %v426 = vadd.f32 %v349, %v425
  %v427 = vpop.f32.mrb[0].mxu0
  %v428 = vpop.f32.mrb[0].mxu0
  %v429 = vadd.f32 %v352, %v428
  %v430 = vpop.f32.mrb[0].mxu0
  %431 = vmatprep.mubr.bf16.mxu0 0
  %432 = vmatmul.mubr.bf16.gmra.mrb[0].mxu0 %v378
  %v433 = vpop.f32.mrb[0].mxu0
  %v434 = vadd.f32 %v357, %v433
  %v435 = vpop.f32.mrb[0].mxu0
  %v436 = vpop.f32.mrb[0].mxu0
  %v437 = vadd.f32 %v360, %v436
  %v438 = vpop.f32.mrb[0].mxu0
  %439 = vmatprep.mubr.bf16.mxu0 0
  %440 = vmatmul.mubr.bf16.gmra.mrb[0].mxu0 %v381
  %v441 = vpop.f32.mrb[0].mxu0
  %v442 = vadd.f32 %v365, %v441
  %v443 = vpop.f32.mrb[0].mxu0
  %v444 = vpop.f32.mrb[0].mxu0
  %v445 = vadd.f32 %v368, %v444
  %v446 = vpop.f32.mrb[0].mxu0
  %447 = vdwg.mxu0
  %v448 = vmul.f32 %v418, -0.5
  %v449 = vmul.f32 %v421, -0.5
  %v450 = vmul.f32 %v426, -0.5
  %v451 = vmul.f32 %v429, -0.5
  %v452 = vmul.f32 %v434, -0.5
  %v453 = vmul.f32 %v437, -0.5
  %v454 = vmul.f32 %v442, -0.5
  %v455 = vmul.f32 %v445, -0.5
  %v456 = vsub.f32 %v448, 7.351508
  %v457 = vsub.f32 %v449, 7.351508
  %v458 = vsub.f32 %v450, 7.351508
  %v459 = vsub.f32 %v451, 7.351508
  %v460 = vsub.f32 %v452, 7.351508
  %v461 = vsub.f32 %v453, 7.351508
  %v462 = vsub.f32 %v454, 7.351508
  %v463 = vsub.f32 %v455, 7.351508
  %vm464 = vcmask 64512
  %465 = vst.msk [vmem:[%s4] sm:$0xff] %vm464, %v456
  %466 = vst.msk [vmem:[%s4 + $0x8] sm:$0xff] %vm464, %v457
  %467 = vst.msk [vmem:[%s4 + $0x10] sm:$0xff] %vm464, %v458
  %468 = vst.msk [vmem:[%s4 + $0x18] sm:$0xff] %vm464, %v459
  %469 = vst.msk [vmem:[%s4 + $0x20] sm:$0xff] %vm464, %v460
  %470 = vst.msk [vmem:[%s4 + $0x28] sm:$0xff] %vm464, %v461
  %471 = vst.msk [vmem:[%s4 + $0x30] sm:$0xff] %vm464, %v462
  %472 = vst.msk [vmem:[%s4 + $0x38] sm:$0xff] %vm464, %v463
  // Predicated region
  $region18: #{tpu_custom_call.1} parent=0 // pred_check
    _
  $region19: #{tpu_custom_call.1} parent=0 // pred_check_branch
    %474 = sbr.rel (0) target = $region21
  $region20: #{tpu_custom_call.1} parent=0 // pred_region
    _
  $region21: #{tpu_custom_call.1} parent=0 // pred_fallthru
    _
  // Predicated region
  $region22: #{tpu_custom_call.1} parent=0 // pred_check
    _
  $region23: #{tpu_custom_call.1} parent=0 // pred_check_branch
    %476 = sbr.rel (0) target = $region25
  $region24: #{tpu_custom_call.1} parent=0 // pred_region
    _
  $region25: #{tpu_custom_call.1} parent=0 // pred_fallthru
    _

</llo_original>
